<compile_context>
chip_gen: v7x
topology: tpu7x:2x2x1
jax: 0.10.0
libtpu: 0.0.40
codegen_flags: <defaults>
</compile_context>

<pallas_src>
import jax
import jax.numpy as jnp
from jax.experimental import pallas as pl
from jax.experimental.pallas import tpu as pltpu


def _round_up(v, m):
    return (v + m - 1) // m * m


# --------------------------------------------------------------------------
# Pass 1: h = x @ W_gat (bf16 MXU, f32 acc), attention pre-scores
#         s[:, :H] = a_dst . h_i   s[:, H:2H] = a_src . h_i   (rest of 128 lanes: 0)
# --------------------------------------------------------------------------
def feat_kernel(x_ref, w_ref, a_ref, h_ref, s_ref):
    xb = x_ref[...].astype(jnp.bfloat16)
    h = jnp.dot(xb, w_ref[...], preferred_element_type=jnp.float32)      # (tile, hcp)
    hb = h.astype(jnp.bfloat16)
    h_ref[...] = hb
    # bf16 x bf16 pre-score matmul (f32 MXU matmuls are multi-pass on v5e/v6e);
    # precision loss is negligible since scores are max-subtracted before exp.
    s_ref[...] = jnp.dot(hb, a_ref[...], preferred_element_type=jnp.float32)


# --------------------------------------------------------------------------
# Pass 2: GAT attention (online softmax over source tiles) + bias + BN1 + ELU
# --------------------------------------------------------------------------
def gat_attention_kernel(adj_ref, s_ref, ssrc_ref, h_ref, hmask_ref,
                         bias_ref, scale_ref, shift_ref,
                         y_ref, m_sc, l_sc, acc_sc):
    k = pl.program_id(1)
    heads = ssrc_ref.shape[0]

    @pl.when(k == 0)
    def _():
        m_sc[...] = jnp.full(m_sc.shape, -1e30, jnp.float32)
        l_sc[...] = jnp.zeros(l_sc.shape, jnp.float32)
        acc_sc[...] = jnp.zeros(acc_sc.shape, jnp.float32)

    # Additive mask built once per block; self-loops are already folded into adj.
    neg = jnp.where(adj_ref[...] > 0, 0.0, -1e30).astype(jnp.float32)    # (tm, tk)
    block_has_edges = jnp.max(neg) > -1.0

    @pl.when(block_has_edges)
    def _():
        h_src = h_ref[...]                       # (tk, hcp) bf16, dense head packing
        sdst = s_ref[...]                        # (tm, 128) f32, cols [0:H] = dst scores
        ssrc = ssrc_ref[...]                     # (H, tk)  f32
        for hd in range(heads):
            e = sdst[:, hd:hd + 1] + ssrc[hd:hd + 1, :]                  # (tm, tk)
            e = jnp.maximum(e, 0.2 * e)                                  # LeakyReLU(0.2)
            e = e + neg                                                  # mask fill
            m_prev = m_sc[:, hd:hd + 1]
            m_new = jnp.maximum(m_prev, jnp.max(e, axis=1, keepdims=True))
            corr = jnp.exp(m_prev - m_new)
            # masked entries either underflow to exactly 0, or (fully-masked row so
            # far) get wiped later by corr == 0 once the row's self-loop tile lands.
            p = jnp.exp(e - m_new)
            l_sc[:, hd:hd + 1] = corr * l_sc[:, hd:hd + 1] + jnp.sum(p, axis=1,
                                                                     keepdims=True)
            m_sc[:, hd:hd + 1] = m_new
            acc_sc[hd] = corr * acc_sc[hd] + jnp.dot(
                p.astype(jnp.bfloat16), h_src, preferred_element_type=jnp.float32)

    @pl.when(k == pl.num_programs(1) - 1)
    def _():
        # every row has its self-loop, so the denominator is > 0
        inv = pl.reciprocal(l_sc[...], approx=True)                      # (tm, H)
        g = jnp.zeros(y_ref.shape, jnp.float32)
        for hd in range(heads):
            # repack per-head accumulators into the dense head layout
            g = g + acc_sc[hd] * (inv[:, hd:hd + 1] * hmask_ref[hd:hd + 1, :])
        g = g + bias_ref[...]
        yv = g * scale_ref[...] + shift_ref[...]                         # folded BN1
        y_ref[...] = jnp.where(yv > 0.0, yv,
                               jnp.exp(jnp.minimum(yv, 0.0)) - 1.0).astype(y_ref.dtype)


# --------------------------------------------------------------------------
# Pass 3: GIN  z = Linear((1+eps)*y_i + sum_j adj[i,j] y_j) + BN2 + ELU
# --------------------------------------------------------------------------
def gin_kernel(eps_ref, adj_ref, ysrc_ref, yrow_ref, w_ref, b_ref,
               scale_ref, shift_ref, out_ref, agg_sc):
    k = pl.program_id(1)

    @pl.when(k == 0)
    def _():
        agg_sc[...] = jnp.zeros(agg_sc.shape, jnp.float32)

    # adj and y are both already bf16 MXU operands; accumulate in f32.
    agg_sc[...] += jnp.dot(adj_ref[...], ysrc_ref[...],
                           preferred_element_type=jnp.float32)

    @pl.when(k == pl.num_programs(1) - 1)
    def _():
        eps = eps_ref[0, 0]
        hg = (1.0 + eps) * yrow_ref[...].astype(jnp.float32) + agg_sc[...]
        z = jnp.dot(hg.astype(jnp.bfloat16), w_ref[...],
                    preferred_element_type=jnp.float32) + b_ref[...]
        z = z * scale_ref[...] + shift_ref[...]                          # folded BN2
        out_ref[...] = jnp.where(z > 0.0, z, jnp.exp(jnp.minimum(z, 0.0)) - 1.0)


# --------------------------------------------------------------------------
# Wrapper: dense head packing, bf16 streams, BN folding, three pallas_calls
# --------------------------------------------------------------------------
def gnn_encoder_forward(x, adj, params, *, tile=256):
    f32, bf16 = jnp.float32, jnp.bfloat16
    N, fin = x.shape
    heads, C = params["a_src"].shape
    hid = params["w_gat"].shape[1]           # = heads * C (concat head layout)
    out_ch = params["w_gin"].shape[1]
    bn_eps = 1e-5
    assert hid == heads * C and 2 * heads <= 128

    hcp = _round_up(hid, 128)                # dense head packing, one lane pad
    fin_p = _round_up(fin, 128)
    out_p = _round_up(out_ch, 128)
    n_p = _round_up(max(N, tile), tile)
    n_row = n_p // tile

    # ---- node features ----
    xp = jnp.zeros((n_p, fin_p), f32).at[:N, :fin].set(x.astype(f32))

    # ---- adjacency (bf16: compared in pass 2, bf16 MXU operand in pass 3) ----
    adj_gin = jnp.zeros((n_p, n_p), bf16).at[:N, :N].set(adj.astype(bf16))
    diag = jnp.arange(n_p)
    adj_gat = adj_gin.at[diag, diag].set(1.0)   # self-loops incl. padded rows

    # ---- GAT params: dense head packing, bf16 matmul operands ----
    w_gat_p = jnp.zeros((fin_p, hcp), bf16).at[:fin, :hid].set(
        params["w_gat"].astype(bf16))
    a_mat = jnp.zeros((hcp, 128), bf16)          # cols [0,H): a_dst, [H,2H): a_src
    hmask = jnp.zeros((heads, hcp), f32)         # per-head column selector (epilogue)
    for h in range(heads):
        lo = h * C
        a_mat = a_mat.at[lo:lo + C, h].set(params["a_dst"][h].astype(bf16))
        a_mat = a_mat.at[lo:lo + C, heads + h].set(params["a_src"][h].astype(bf16))
        hmask = hmask.at[h, lo:lo + C].set(1.0)
    b_gat_p = jnp.zeros((1, hcp), f32).at[:, :hid].set(params["b_gat"].reshape(1, -1))

    s1 = params["bn1_gamma"].reshape(-1) * jax.lax.rsqrt(
        params["bn1_var"].reshape(-1) + bn_eps)
    t1 = params["bn1_beta"].reshape(-1) - params["bn1_mean"].reshape(-1) * s1
    bn1_scale = jnp.ones((1, hcp), f32).at[:, :hid].set(s1.reshape(1, -1))
    bn1_shift = jnp.zeros((1, hcp), f32).at[:, :hid].set(t1.reshape(1, -1))

    # ---- GIN params ----
    w_gin_p = jnp.zeros((hcp, out_p), bf16).at[:hid, :out_ch].set(
        params["w_gin"].astype(bf16))
    b_gin_p = jnp.zeros((1, out_p), f32).at[:, :out_ch].set(
        params["b_gin"].reshape(1, -1))
    s2 = params["bn2_gamma"].reshape(-1) * jax.lax.rsqrt(
        params["bn2_var"].reshape(-1) + bn_eps)
    t2 = params["bn2_beta"].reshape(-1) - params["bn2_mean"].reshape(-1) * s2
    bn2_scale = jnp.ones((1, out_p), f32).at[:, :out_ch].set(s2.reshape(1, -1))
    bn2_shift = jnp.zeros((1, out_p), f32).at[:, :out_ch].set(t2.reshape(1, -1))
    eps_gin = params["eps_gin"].reshape(1, 1).astype(f32)

    # v5e scoped-VMEM default is 16 MiB; raise it once blocks get big (tile > 256).
    vmem_limit = (64 * 1024 * 1024) if tile > 256 else None

    # ---------------- pass 1: features + attention pre-scores ----------------
    h_p, s_all = pl.pallas_call(
        feat_kernel,
        out_shape=(jax.ShapeDtypeStruct((n_p, hcp), bf16),
                   jax.ShapeDtypeStruct((n_p, 128), f32)),
        grid=(n_row,),
        in_specs=[pl.BlockSpec((tile, fin_p), lambda i: (i, 0)),
                  pl.BlockSpec((fin_p, hcp), lambda i: (0, 0)),
                  pl.BlockSpec((hcp, 128), lambda i: (0, 0))],
        out_specs=(pl.BlockSpec((tile, hcp), lambda i: (i, 0)),
                   pl.BlockSpec((tile, 128), lambda i: (i, 0))),
        compiler_params=pltpu.CompilerParams(
            dimension_semantics=("parallel",), vmem_limit_bytes=vmem_limit),
    )(xp, w_gat_p, a_mat)

    ssrc_t = jnp.transpose(s_all[:, heads:2 * heads])       # (H, n_p): source scores

    # ---------------- pass 2: GAT attention + BN1 + ELU ----------------
    cost2 = pl.CostEstimate(
        flops=int(2 * heads * n_p * n_p * (hcp + 4)),
        transcendentals=int(2 * heads * n_p * n_p),
        bytes_accessed=int(2 * n_p * n_p + 2 * n_row * n_p * hcp + 2 * n_p * hcp
                           + 4 * n_row * n_p * 128))
    y = pl.pallas_call(
        gat_attention_kernel,
        out_shape=jax.ShapeDtypeStruct((n_p, hcp), bf16),
        grid=(n_row, n_row),
        in_specs=[pl.BlockSpec((tile, tile), lambda i, k: (i, k)),     # adj (+diag)
                  pl.BlockSpec((tile, 128), lambda i, k: (i, 0)),      # dst scores
                  pl.BlockSpec((heads, tile), lambda i, k: (0, k)),    # src scores
                  pl.BlockSpec((tile, hcp), lambda i, k: (k, 0)),      # h (sources)
                  pl.BlockSpec((heads, hcp), lambda i, k: (0, 0)),     # head mask
                  pl.BlockSpec((1, hcp), lambda i, k: (0, 0)),         # GAT bias
                  pl.BlockSpec((1, hcp), lambda i, k: (0, 0)),         # BN1 scale
                  pl.BlockSpec((1, hcp), lambda i, k: (0, 0))],        # BN1 shift
        out_specs=pl.BlockSpec((tile, hcp), lambda i, k: (i, 0)),
        scratch_shapes=[pltpu.VMEM((tile, heads), f32),                # running max
                        pltpu.VMEM((tile, heads), f32),                # running denom
                        pltpu.VMEM((heads, tile, hcp), f32)],          # per-head acc
        compiler_params=pltpu.CompilerParams(
            dimension_semantics=("parallel", "arbitrary"),
            vmem_limit_bytes=vmem_limit),
        cost_estimate=cost2,
    )(adj_gat, s_all, ssrc_t, h_p, hmask, b_gat_p, bn1_scale, bn1_shift)

    # ---------------- pass 3: GIN + BN2 + ELU ----------------
    cost3 = pl.CostEstimate(
        flops=int(2 * n_p * n_p * hcp + 2 * n_p * hcp * out_p),
        transcendentals=int(n_p * out_p),
        bytes_accessed=int(2 * n_p * n_p + 2 * n_row * n_p * hcp + 2 * n_p * hcp
                           + 4 * n_p * out_p))
    out_full = pl.pallas_call(
        gin_kernel,
        out_shape=jax.ShapeDtypeStruct((n_p, out_p), f32),
        grid=(n_row, n_row),
        in_specs=[pl.BlockSpec(memory_space=pltpu.MemorySpace.SMEM),   # eps scalar
                  pl.BlockSpec((tile, tile), lambda i, k: (i, k)),     # adj (no diag)
                  pl.BlockSpec((tile, hcp), lambda i, k: (k, 0)),      # y (sources)
                  pl.BlockSpec((tile, hcp), lambda i, k: (i, 0)),      # y (targets)
                  pl.BlockSpec((hcp, out_p), lambda i, k: (0, 0)),     # W_gin
                  pl.BlockSpec((1, out_p), lambda i, k: (0, 0)),       # b_gin
                  pl.BlockSpec((1, out_p), lambda i, k: (0, 0)),       # BN2 scale
                  pl.BlockSpec((1, out_p), lambda i, k: (0, 0))],      # BN2 shift
        out_specs=pl.BlockSpec((tile, out_p), lambda i, k: (i, 0)),
        scratch_shapes=[pltpu.VMEM((tile, hcp), f32)],                 # neighbor sum
        compiler_params=pltpu.CompilerParams(
            dimension_semantics=("parallel", "arbitrary"),
            vmem_limit_bytes=vmem_limit),
        cost_estimate=cost3,
    )(eps_gin, adj_gin, y, y, w_gin_p, b_gin_p, bn2_scale, bn2_shift)

    return out_full[:N, :out_ch]


if __name__ == "__main__":
    key = jax.random.PRNGKey(0)
    N, Fin, hidden, heads, out_ch = 8, 4, 8, 2, 8
    C = hidden // heads
    ks = jax.random.split(key, 10)

    # node features
    x = jax.random.normal(ks[0], (N, Fin), dtype=jnp.float32)

    # deterministic random edge_index -> dense adjacency (row=target, col=source)
    n_edges = 16
    tgt = jax.random.randint(ks[1], (n_edges,), 0, N)
    src = jax.random.randint(ks[2], (n_edges,), 0, N)
    adj = jnp.zeros((N, N), jnp.float32).at[tgt, src].set(1.0)

    params = dict(
        # GATConv(Fin, hidden // heads, heads): lin weight, attention vectors, bias
        w_gat=(jax.random.normal(ks[3], (Fin, hidden)) * 0.5).astype(jnp.float32),
        a_src=(jax.random.normal(ks[4], (heads, C)) * 0.5).astype(jnp.float32),
        a_dst=(jax.random.normal(ks[5], (heads, C)) * 0.5).astype(jnp.float32),
        b_gat=jnp.zeros((hidden,), jnp.float32),
        # BatchNorm1d(hidden): eval-mode running stats
        bn1_gamma=jnp.ones((hidden,), jnp.float32),
        bn1_beta=jnp.zeros((hidden,), jnp.float32),
        bn1_mean=jnp.zeros((hidden,), jnp.float32),
        bn1_var=jnp.ones((hidden,), jnp.float32),
        # GINConv(Linear(hidden, out), train_eps=True): eps init 0, weight (in, out)
        eps_gin=jnp.zeros((1, 1), jnp.float32),
        w_gin=(jax.random.normal(ks[6], (hidden, out_ch)) * 0.5).astype(jnp.float32),
        b_gin=(jax.random.normal(ks[7], (out_ch,)) * 0.1).astype(jnp.float32),
        # BatchNorm1d(out_channels)
        bn2_gamma=jnp.ones((out_ch,), jnp.float32),
        bn2_beta=jnp.zeros((out_ch,), jnp.float32),
        bn2_mean=jnp.zeros((out_ch,), jnp.float32),
        bn2_var=jnp.ones((out_ch,), jnp.float32),
    )

    out = gnn_encoder_forward(x, adj, params)
    jax.block_until_ready(out)
    assert out.shape == (N, out_ch) and out.dtype == jnp.float32
    assert bool(jnp.all(jnp.isfinite(out)))
    print("KERNEL_OK")
</pallas_src>

<mosaic_0001>
module attributes {stable_mosaic.version = 11 : i64} {
  func.func @feat_kernel(%arg0: i32, %arg1: memref<256x128xf32, #tpu.memory_space<vmem>>, %arg2: memref<128x128xbf16, #tpu.memory_space<vmem>>, %arg3: memref<128x128xbf16, #tpu.memory_space<vmem>>, %arg4: memref<256x128xbf16, #tpu.memory_space<vmem>>, %arg5: memref<256x128xf32, #tpu.memory_space<vmem>>) attributes {dimension_semantics = [#tpu.dimension_semantics<parallel>], iteration_bounds = array<i64: 1>, scalar_prefetch = 0 : i64, scratch_operands = 0 : i64, tpu.core_type = #tpu.core_type<tc>, window_params = [{transform_indices = @transform_0, window_bounds = array<i64: 256, 128>}, {pipeline_mode = #tpu.pipeline_mode<synchronous>, transform_indices = @transform_1, window_bounds = array<i64: 128, 128>}, {pipeline_mode = #tpu.pipeline_mode<synchronous>, transform_indices = @transform_2, window_bounds = array<i64: 128, 128>}, {transform_indices = @transform_3, window_bounds = array<i64: 256, 128>}, {transform_indices = @transform_4, window_bounds = array<i64: 256, 128>}]} {
    %c0 = arith.constant 0 : index
    %c0_0 = arith.constant 0 : index
    %0 = vector.load %arg1[%c0, %c0_0] : memref<256x128xf32, #tpu.memory_space<vmem>>, vector<256x128xf32>
    %1 = arith.truncf %0 : vector<256x128xf32> to vector<256x128xbf16>
    %c0_1 = arith.constant 0 : index
    %c0_2 = arith.constant 0 : index
    %2 = vector.load %arg2[%c0_1, %c0_2] : memref<128x128xbf16, #tpu.memory_space<vmem>>, vector<128x128xbf16>
    %cst = arith.constant dense<0.000000e+00> : vector<256x128xf32>
    %3 = tpu.matmul %1, %2, %cst {dimension_numbers = #tpu.dot_dimension_numbers<[1], [0], [0], [1], [0, 0, 1, 1], [], []>} : vector<256x128xbf16>, vector<128x128xbf16>, vector<256x128xf32> -> vector<256x128xf32>
    %4 = arith.truncf %3 : vector<256x128xf32> to vector<256x128xbf16>
    %c0_3 = arith.constant 0 : index
    %c0_4 = arith.constant 0 : index
    %5 = vector.load %arg4[%c0_3, %c0_4] : memref<256x128xbf16, #tpu.memory_space<vmem>>, vector<256x128xbf16>
    tpu.vector_store %arg4[%c0_3, %c0_4], %4 {strides = array<i32>} : memref<256x128xbf16, #tpu.memory_space<vmem>>, vector<256x128xbf16>,
    %c0_5 = arith.constant 0 : index
    %c0_6 = arith.constant 0 : index
    %6 = vector.load %arg3[%c0_5, %c0_6] : memref<128x128xbf16, #tpu.memory_space<vmem>>, vector<128x128xbf16>
    %cst_7 = arith.constant dense<0.000000e+00> : vector<256x128xf32>
    %7 = tpu.matmul %4, %6, %cst_7 {dimension_numbers = #tpu.dot_dimension_numbers<[1], [0], [0], [1], [0, 0, 1, 1], [], []>} : vector<256x128xbf16>, vector<128x128xbf16>, vector<256x128xf32> -> vector<256x128xf32>
    %c0_8 = arith.constant 0 : index
    %c0_9 = arith.constant 0 : index
    %8 = vector.load %arg5[%c0_8, %c0_9] : memref<256x128xf32, #tpu.memory_space<vmem>>, vector<256x128xf32>
    tpu.vector_store %arg5[%c0_8, %c0_9], %7 {strides = array<i32>} : memref<256x128xf32, #tpu.memory_space<vmem>>, vector<256x128xf32>,
    return
  }
  func.func @transform_0(%arg0: i32) -> (i32, i32) {
    %c0_i32 = arith.constant 0 : i32
    %c0_i32_0 = arith.constant 0 : i32
    return %arg0, %c0_i32 : i32, i32
  }
  func.func @transform_1(%arg0: i32) -> (i32, i32) {
    %c0_i32 = arith.constant 0 : i32
    %c0_i32_0 = arith.constant 0 : i32
    %c0_i32_1 = arith.constant 0 : i32
    return %c0_i32, %c0_i32_0 : i32, i32
  }
  func.func @transform_2(%arg0: i32) -> (i32, i32) {
    %c0_i32 = arith.constant 0 : i32
    %c0_i32_0 = arith.constant 0 : i32
    %c0_i32_1 = arith.constant 0 : i32
    return %c0_i32, %c0_i32_0 : i32, i32
  }
  func.func @transform_3(%arg0: i32) -> (i32, i32) {
    %c0_i32 = arith.constant 0 : i32
    %c0_i32_0 = arith.constant 0 : i32
    return %arg0, %c0_i32 : i32, i32
  }
  func.func @transform_4(%arg0: i32) -> (i32, i32) {
    %c0_i32 = arith.constant 0 : i32
    %c0_i32_0 = arith.constant 0 : i32
    return %arg0, %c0_i32 : i32, i32
  }
}

</mosaic_0001>

<llo_original>
// kernel: tpu_custom_call.1
$region0: #{tpu_custom_call.1}
  #allocation0 [shape = 'u32[]', space=smem, size = 0x4, offset = 0x4, fixed_abs, tag = 'smem constant byte address 0x4 - core index']
  #allocation1 [shape = 'u32[144,128]{1,0:T(1,128)}', space=vmem, size = 0x12000, scoped, tag = 'internal scratch']
  %s0 = inlined_call_operand.hbm [shape: f32[256,128], index: 0, kind: input, shape index: {}]
  %s1 = inlined_call_operand.hbm [shape: bf16[128,128], index: 1, kind: input, shape index: {}]
  %s2 = inlined_call_operand.hbm [shape: bf16[128,128], index: 2, kind: input, shape index: {}]
  %s3 = inlined_call_operand.hbm [shape: bf16[256,128], index: 3, kind: output, shape index: {0}]
  %s4 = inlined_call_operand.hbm [shape: f32[256,128], index: 4, kind: output, shape index: {1}]
  %5 = xla_tuple %s3, %s4
  %s6 = sld [smem:[#allocation0]]
  $region42: #{tpu_custom_call.1} parent=0
    _
  %s8 = ssub.s32 1, %s6
  %s9 = scalar_select 0, %s8, %s6
  $region1: #{tpu_custom_call.1} parent=0
    #allocation2 [shape = 'u8[131072]{0}', space=vmem, size = 0x20000, scoped, tag = 'input window, operand 0, single buffered']
    #allocation3 [shape = 's32[1]{0}', space=sflag, size = 0x4, scoped, tag = 'scoped memory for tpu_custom_call.1']
    #allocation4 [shape = 's32[1]{0}', space=sflag, size = 0x4, scoped, tag = 'scoped memory for tpu_custom_call.1']
    #allocation5 [shape = 'u8[32768]{0}', space=vmem, size = 0x8000, scoped, tag = 'input window, operand 1, single buffered']
    #allocation6 [shape = 's32[1]{0}', space=sflag, size = 0x4, scoped, tag = 'scoped memory for tpu_custom_call.1']
    #allocation7 [shape = 'u8[32768]{0}', space=vmem, size = 0x8000, scoped, tag = 'input window, operand 2, single buffered']
    #allocation8 [shape = 'u8[65536]{0}', space=vmem, size = 0x10000, scoped, tag = 'output window, operand 0, single buffered']
    #allocation9 [shape = 'u8[131072]{0}', space=vmem, size = 0x20000, scoped, tag = 'output window, operand 1, single buffered']
    #allocation10 [shape = 's32[1]{0}', space=sflag, size = 0x4, scoped, tag = 'scoped memory for tpu_custom_call.1']
    %10 = vsyncpa [#allocation3], 0
    %11 = vsyncpa [#allocation6], 0
    %12 = vsyncpa [#allocation4], 0
    %13 = vsyncpa [#allocation10], 0
    // Predicated region
    $region2: #{tpu_custom_call.1} parent=1 // pred_check
      _
    $region3: #{tpu_custom_call.1} parent=1 // pred_check_branch
      %15 = sbr.rel (0) target = $region5
    $region4: #{tpu_custom_call.1} parent=1 // pred_region
      %s17 = ssub.s32 4096, 4096
      %18 = vsyncadd [#allocation3], %s17
      %s19 = sshll.u32 [#allocation2], 4
      %s20 = int_to_ptr.vmem [resolvable:$true] %s19
      %25 = dma.hbm_to_vmem [thread:$0]  %s0, 4096, %s20, [#allocation3], 128, 128, 8
    $region5: #{tpu_custom_call.1} parent=1 // pred_fallthru
      _
    // Predicated region
    $region6: #{tpu_custom_call.1} parent=1 // pred_check
      _
    $region7: #{tpu_custom_call.1} parent=1 // pred_check_branch
      %27 = sbr.rel (0) target = $region9
    $region8: #{tpu_custom_call.1} parent=1 // pred_region
      %s29 = ssub.s32 1024, 1024
      %30 = vsyncadd [#allocation6], %s29
      %s31 = sshll.u32 [#allocation5], 4
      %s32 = int_to_ptr.vmem [resolvable:$true] %s31
      %37 = dma.hbm_to_vmem [thread:$0]  %s1, 1024, %s32, [#allocation6], 64, 64, 4
    $region9: #{tpu_custom_call.1} parent=1 // pred_fallthru
      _
    // Predicated region
    $region10: #{tpu_custom_call.1} parent=1 // pred_check
      _
    $region11: #{tpu_custom_call.1} parent=1 // pred_check_branch
      %39 = sbr.rel (0) target = $region13
    $region12: #{tpu_custom_call.1} parent=1 // pred_region
      %s41 = ssub.s32 1024, 1024
      %42 = vsyncadd [#allocation6], %s41
      %s43 = sshll.u32 [#allocation7], 4
      %s44 = int_to_ptr.vmem [resolvable:$true] %s43
      %49 = dma.hbm_to_vmem [thread:$0]  %s2, 1024, %s44, [#allocation6], 64, 64, 4
    $region13: #{tpu_custom_call.1} parent=1 // pred_fallthru
      _
    // Predicated region
    $region14: #{tpu_custom_call.1} parent=1 // pred_check
      _
    $region15: #{tpu_custom_call.1} parent=1 // pred_check_branch
      %51 = sbr.rel (0) target = $region17
    $region16: #{tpu_custom_call.1} parent=1 // pred_region
      %52 = dma.done [#allocation3], 4096
    $region17: #{tpu_custom_call.1} parent=1 // pred_fallthru
      _
    // Predicated region
    $region18: #{tpu_custom_call.1} parent=1 // pred_check
      _
    $region19: #{tpu_custom_call.1} parent=1 // pred_check_branch
      %54 = sbr.rel (0) target = $region21
    $region20: #{tpu_custom_call.1} parent=1 // pred_region
      %55 = dma.done [#allocation6], 1024
    $region21: #{tpu_custom_call.1} parent=1 // pred_fallthru
      _
    // Predicated region
    $region22: #{tpu_custom_call.1} parent=1 // pred_check
      _
    $region23: #{tpu_custom_call.1} parent=1 // pred_check_branch
      %57 = sbr.rel (0) target = $region25
    $region24: #{tpu_custom_call.1} parent=1 // pred_region
      %58 = dma.done [#allocation6], 1024
    $region25: #{tpu_custom_call.1} parent=1 // pred_fallthru
      _
    %v60 = vld [vmem:[#allocation2] sm:$0xff]
    %v61 = vld [vmem:[#allocation2 + $0x8] sm:$0xff]
    %v62 = vld [vmem:[#allocation2 + $0x10] sm:$0xff]
    %v63 = vld [vmem:[#allocation2 + $0x18] sm:$0xff]
    %v64 = vld [vmem:[#allocation2 + $0x20] sm:$0xff]
    %v65 = vld [vmem:[#allocation2 + $0x28] sm:$0xff]
    %v66 = vld [vmem:[#allocation2 + $0x30] sm:$0xff]
    %v67 = vld [vmem:[#allocation2 + $0x38] sm:$0xff]
    %v68 = vld [vmem:[#allocation2 + $0x40] sm:$0xff]
    %v69 = vld [vmem:[#allocation2 + $0x48] sm:$0xff]
    %v70 = vld [vmem:[#allocation2 + $0x50] sm:$0xff]
    %v71 = vld [vmem:[#allocation2 + $0x58] sm:$0xff]
    %v72 = vld [vmem:[#allocation2 + $0x60] sm:$0xff]
    %v73 = vld [vmem:[#allocation2 + $0x68] sm:$0xff]
    %v74 = vld [vmem:[#allocation2 + $0x70] sm:$0xff]
    %v75 = vld [vmem:[#allocation2 + $0x78] sm:$0xff]
    %v76 = vld [vmem:[#allocation2 + $0x80] sm:$0xff]
    %v77 = vld [vmem:[#allocation2 + $0x88] sm:$0xff]
    %v78 = vld [vmem:[#allocation2 + $0x90] sm:$0xff]
    %v79 = vld [vmem:[#allocation2 + $0x98] sm:$0xff]
    %v80 = vld [vmem:[#allocation2 + $0xa0] sm:$0xff]
    %v81 = vld [vmem:[#allocation2 + $0xa8] sm:$0xff]
    %v82 = vld [vmem:[#allocation2 + $0xb0] sm:$0xff]
    %v83 = vld [vmem:[#allocation2 + $0xb8] sm:$0xff]
    %v84 = vld [vmem:[#allocation2 + $0xc0] sm:$0xff]
    %v85 = vld [vmem:[#allocation2 + $0xc8] sm:$0xff]
    %v86 = vld [vmem:[#allocation2 + $0xd0] sm:$0xff]
    %v87 = vld [vmem:[#allocation2 + $0xd8] sm:$0xff]
    %v88 = vld [vmem:[#allocation2 + $0xe0] sm:$0xff]
    %v89 = vld [vmem:[#allocation2 + $0xe8] sm:$0xff]
    %v90 = vld [vmem:[#allocation2 + $0xf0] sm:$0xff]
    %v91 = vld [vmem:[#allocation2 + $0xf8] sm:$0xff]
    %v92 = vpack.c.bf16 %v61, %v60
    %v93 = vpack.c.bf16 %v63, %v62
    %v94 = vpack.c.bf16 %v65, %v64
    %v95 = vpack.c.bf16 %v67, %v66
    %v96 = vpack.c.bf16 %v69, %v68
    %v97 = vpack.c.bf16 %v71, %v70
    %v98 = vpack.c.bf16 %v73, %v72
    %v99 = vpack.c.bf16 %v75, %v74
    %v100 = vpack.c.bf16 %v77, %v76
    %v101 = vpack.c.bf16 %v79, %v78
    %v102 = vpack.c.bf16 %v81, %v80
    %v103 = vpack.c.bf16 %v83, %v82
    %v104 = vpack.c.bf16 %v85, %v84
    %v105 = vpack.c.bf16 %v87, %v86
    %v106 = vpack.c.bf16 %v89, %v88
    %v107 = vpack.c.bf16 %v91, %v90
    %v108 = vld [vmem:[#allocation5] sm:$0xf]
    %v109 = vld [vmem:[#allocation5 + $0x4] sm:$0xf]
    %v110 = vld [vmem:[#allocation5 + $0x8] sm:$0xf]
    %v111 = vld [vmem:[#allocation5 + $0xc] sm:$0xf]
    %v112 = vld [vmem:[#allocation5 + $0x10] sm:$0xf]
    %v113 = vld [vmem:[#allocation5 + $0x14] sm:$0xf]
    %v114 = vld [vmem:[#allocation5 + $0x18] sm:$0xf]
    %v115 = vld [vmem:[#allocation5 + $0x1c] sm:$0xf]
    %v116 = vld [vmem:[#allocation5 + $0x20] sm:$0xf]
    %v117 = vld [vmem:[#allocation5 + $0x24] sm:$0xf]
    %v118 = vld [vmem:[#allocation5 + $0x28] sm:$0xf]
    %v119 = vld [vmem:[#allocation5 + $0x2c] sm:$0xf]
    %v120 = vld [vmem:[#allocation5 + $0x30] sm:$0xf]
    %v121 = vld [vmem:[#allocation5 + $0x34] sm:$0xf]
    %v122 = vld [vmem:[#allocation5 + $0x38] sm:$0xf]
    %v123 = vld [vmem:[#allocation5 + $0x3c] sm:$0xf]
    %v140 = vunpack.c.l.b16 %v108
    %v141 = vunpack.c.l.b16 %v109
    %v142 = vunpack.c.l.b16 %v110
    %v143 = vunpack.c.l.b16 %v111
    %v144 = vunpack.c.l.b16 %v112
    %v145 = vunpack.c.l.b16 %v113
    %v146 = vunpack.c.l.b16 %v114
    %v147 = vunpack.c.l.b16 %v115
    %v148 = vunpack.c.l.b16 %v116
    %v149 = vunpack.c.l.b16 %v117
    %v150 = vunpack.c.l.b16 %v118
    %v151 = vunpack.c.l.b16 %v119
    %v152 = vunpack.c.l.b16 %v120
    %v153 = vunpack.c.l.b16 %v121
    %v154 = vunpack.c.l.b16 %v122
    %v155 = vunpack.c.l.b16 %v123
    %v156 = vpack.c.b16 %v141, %v140
    %v157 = vpack.c.b16 %v143, %v142
    %v158 = vpack.c.b16 %v145, %v144
    %v159 = vpack.c.b16 %v147, %v146
    %v160 = vpack.c.b16 %v149, %v148
    %v161 = vpack.c.b16 %v151, %v150
    %v162 = vpack.c.b16 %v153, %v152
    %v163 = vpack.c.b16 %v155, %v154
    %172 = vmatprep.subr.bf16.mxu0 0
    %173 = vmatpush1.bf16.msra.mxu0 %v156
    %174 = vmatprep.subr.bf16.mxu0 0
    %175 = vmatpush1.bf16.msra.mxu0 %v157
    %176 = vmatprep.subr.bf16.mxu0 0
    %177 = vmatpush1.bf16.msra.mxu0 %v158
    %178 = vmatprep.subr.bf16.mxu0 0
    %179 = vmatpush1.bf16.msra.mxu0 %v159
    %180 = vmatprep.subr.bf16.mxu0 0
    %181 = vmatpush1.bf16.msra.mxu0 %v160
    %182 = vmatprep.subr.bf16.mxu0 0
    %183 = vmatpush1.bf16.msra.mxu0 %v161
    %184 = vmatprep.subr.bf16.mxu0 0
    %185 = vmatpush1.bf16.msra.mxu0 %v162
    %186 = vmatprep.subr.bf16.mxu0 0
    %187 = vmatpush1.bf16.msra.mxu0 %v163
    %188 = vmatprep.subr.bf16.mxu0 0
    %189 = vmatpush1.bf16.msra.mxu0 0
    %190 = vmatprep.subr.bf16.mxu0 0
    %191 = vmatpush1.bf16.msra.mxu0 0
    %192 = vmatprep.subr.bf16.mxu0 0
    %193 = vmatpush1.bf16.msra.mxu0 0
    %194 = vmatprep.subr.bf16.mxu0 0
    %195 = vmatpush1.bf16.msra.mxu0 0
    %196 = vmatprep.subr.bf16.mxu0 0
    %197 = vmatpush1.bf16.msra.mxu0 0
    %198 = vmatprep.subr.bf16.mxu0 0
    %199 = vmatpush1.bf16.msra.mxu0 0
    %200 = vmatprep.subr.bf16.mxu0 0
    %201 = vmatpush1.bf16.msra.mxu0 0
    %202 = vmatprep.subr.bf16.mxu0 0
    %203 = vmatpush1.bf16.msra.mxu0 0
    %204 = vmatprep.mubr.bf16.mxu0 0
    %205 = vmatmul.mubr.bf16.gmra.mrb[0].mxu0 %v92
    %v206 = vpop.f32.mrb[0].mxu0
    %v207 = vadd.f32 0.0, %v206
    %v208 = vpop.f32.mrb[0].mxu0
    %v209 = vpop.f32.mrb[0].mxu0
    %v210 = vadd.f32 0.0, %v209
    %v211 = vpop.f32.mrb[0].mxu0
    %212 = vmatprep.mubr.bf16.mxu0 0
    %213 = vmatmul.mubr.bf16.gmra.mrb[0].mxu0 %v93
    %v214 = vpop.f32.mrb[0].mxu0
    %v215 = vadd.f32 0.0, %v214
    %v216 = vpop.f32.mrb[0].mxu0
    %v217 = vpop.f32.mrb[0].mxu0
    %v218 = vadd.f32 0.0, %v217
    %v219 = vpop.f32.mrb[0].mxu0
    %220 = vmatprep.mubr.bf16.mxu0 0
    %221 = vmatmul.mubr.bf16.gmra.mrb[0].mxu0 %v94
    %v222 = vpop.f32.mrb[0].mxu0
    %v223 = vadd.f32 0.0, %v222
    %v224 = vpop.f32.mrb[0].mxu0
    %v225 = vpop.f32.mrb[0].mxu0
    %v226 = vadd.f32 0.0, %v225
    %v227 = vpop.f32.mrb[0].mxu0
    %228 = vmatprep.mubr.bf16.mxu0 0
    %229 = vmatmul.mubr.bf16.gmra.mrb[0].mxu0 %v95
    %v230 = vpop.f32.mrb[0].mxu0
    %v231 = vadd.f32 0.0, %v230
    %v232 = vpop.f32.mrb[0].mxu0
    %v233 = vpop.f32.mrb[0].mxu0
    %v234 = vadd.f32 0.0, %v233
    %v235 = vpop.f32.mrb[0].mxu0
    %236 = vmatprep.mubr.bf16.mxu0 0
    %237 = vmatmul.mubr.bf16.gmra.mrb[0].mxu0 %v96
    %v238 = vpop.f32.mrb[0].mxu0
    %v239 = vadd.f32 0.0, %v238
    %v240 = vpop.f32.mrb[0].mxu0
    %v241 = vpop.f32.mrb[0].mxu0
    %v242 = vadd.f32 0.0, %v241
    %v243 = vpop.f32.mrb[0].mxu0
    %244 = vmatprep.mubr.bf16.mxu0 0
    %245 = vmatmul.mubr.bf16.gmra.mrb[0].mxu0 %v97
    %v246 = vpop.f32.mrb[0].mxu0
    %v247 = vadd.f32 0.0, %v246
    %v248 = vpop.f32.mrb[0].mxu0
    %v249 = vpop.f32.mrb[0].mxu0
    %v250 = vadd.f32 0.0, %v249
    %v251 = vpop.f32.mrb[0].mxu0
    %252 = vmatprep.mubr.bf16.mxu0 0
    %253 = vmatmul.mubr.bf16.gmra.mrb[0].mxu0 %v98
    %v254 = vpop.f32.mrb[0].mxu0
    %v255 = vadd.f32 0.0, %v254
    %v256 = vpop.f32.mrb[0].mxu0
    %v257 = vpop.f32.mrb[0].mxu0
    %v258 = vadd.f32 0.0, %v257
    %v259 = vpop.f32.mrb[0].mxu0
    %260 = vmatprep.mubr.bf16.mxu0 0
    %261 = vmatmul.mubr.bf16.gmra.mrb[0].mxu0 %v99
    %v262 = vpop.f32.mrb[0].mxu0
    %v263 = vadd.f32 0.0, %v262
    %v264 = vpop.f32.mrb[0].mxu0
    %v265 = vpop.f32.mrb[0].mxu0
    %v266 = vadd.f32 0.0, %v265
    %v267 = vpop.f32.mrb[0].mxu0
    %268 = vmatprep.mubr.bf16.mxu0 0
    %269 = vmatmul.mubr.bf16.gmra.mrb[0].mxu0 %v100
    %v270 = vpop.f32.mrb[0].mxu0
    %v271 = vadd.f32 0.0, %v270
    %v272 = vpop.f32.mrb[0].mxu0
    %v273 = vpop.f32.mrb[0].mxu0
    %v274 = vadd.f32 0.0, %v273
    %v275 = vpop.f32.mrb[0].mxu0
    %276 = vmatprep.mubr.bf16.mxu0 0
    %277 = vmatmul.mubr.bf16.gmra.mrb[0].mxu0 %v101
    %v278 = vpop.f32.mrb[0].mxu0
    %v279 = vadd.f32 0.0, %v278
    %v280 = vpop.f32.mrb[0].mxu0
    %v281 = vpop.f32.mrb[0].mxu0
    %v282 = vadd.f32 0.0, %v281
    %v283 = vpop.f32.mrb[0].mxu0
    %284 = vmatprep.mubr.bf16.mxu0 0
    %285 = vmatmul.mubr.bf16.gmra.mrb[0].mxu0 %v102
    %v286 = vpop.f32.mrb[0].mxu0
    %v287 = vadd.f32 0.0, %v286
    %v288 = vpop.f32.mrb[0].mxu0
    %v289 = vpop.f32.mrb[0].mxu0
    %v290 = vadd.f32 0.0, %v289
    %v291 = vpop.f32.mrb[0].mxu0
    %292 = vmatprep.mubr.bf16.mxu0 0
    %293 = vmatmul.mubr.bf16.gmra.mrb[0].mxu0 %v103
    %v294 = vpop.f32.mrb[0].mxu0
    %v295 = vadd.f32 0.0, %v294
    %v296 = vpop.f32.mrb[0].mxu0
    %v297 = vpop.f32.mrb[0].mxu0
    %v298 = vadd.f32 0.0, %v297
    %v299 = vpop.f32.mrb[0].mxu0
    %300 = vmatprep.mubr.bf16.mxu0 0
    %301 = vmatmul.mubr.bf16.gmra.mrb[0].mxu0 %v104
    %v302 = vpop.f32.mrb[0].mxu0
    %v303 = vadd.f32 0.0, %v302
    %v304 = vpop.f32.mrb[0].mxu0
    %v305 = vpop.f32.mrb[0].mxu0
    %v306 = vadd.f32 0.0, %v305
    %v307 = vpop.f32.mrb[0].mxu0
    %308 = vmatprep.mubr.bf16.mxu0 0
    %309 = vmatmul.mubr.bf16.gmra.mrb[0].mxu0 %v105
    %v310 = vpop.f32.mrb[0].mxu0
    %v311 = vadd.f32 0.0, %v310
    %v312 = vpop.f32.mrb[0].mxu0
    %v313 = vpop.f32.mrb[0].mxu0
    %v314 = vadd.f32 0.0, %v313
    %v315 = vpop.f32.mrb[0].mxu0
    %316 = vmatprep.mubr.bf16.mxu0 0
    %317 = vmatmul.mubr.bf16.gmra.mrb[0].mxu0 %v106
    %v318 = vpop.f32.mrb[0].mxu0
    %v319 = vadd.f32 0.0, %v318
    %v320 = vpop.f32.mrb[0].mxu0
    %v321 = vpop.f32.mrb[0].mxu0
    %v322 = vadd.f32 0.0, %v321
    %v323 = vpop.f32.mrb[0].mxu0
    %324 = vmatprep.mubr.bf16.mxu0 0
    %325 = vmatmul.mubr.bf16.gmra.mrb[0].mxu0 %v107
    %v326 = vpop.f32.mrb[0].mxu0
    %v327 = vadd.f32 0.0, %v326
    %v328 = vpop.f32.mrb[0].mxu0
    %v329 = vpop.f32.mrb[0].mxu0
    %v330 = vadd.f32 0.0, %v329
    %v331 = vpop.f32.mrb[0].mxu0
    %332 = vdwg.mxu0
    %v333 = vpack.c.bf16 %v210, %v207
    %v334 = vpack.c.bf16 %v218, %v215
    %v335 = vpack.c.bf16 %v226, %v223
    %v336 = vpack.c.bf16 %v234, %v231
    %v337 = vpack.c.bf16 %v242, %v239
    %v338 = vpack.c.bf16 %v250, %v247
    %v339 = vpack.c.bf16 %v258, %v255
    %v340 = vpack.c.bf16 %v266, %v263
    %v341 = vpack.c.bf16 %v274, %v271
    %v342 = vpack.c.bf16 %v282, %v279
    %v343 = vpack.c.bf16 %v290, %v287
    %v344 = vpack.c.bf16 %v298, %v295
    %v345 = vpack.c.bf16 %v306, %v303
    %v346 = vpack.c.bf16 %v314, %v311
    %v347 = vpack.c.bf16 %v322, %v319
    %v348 = vpack.c.bf16 %v330, %v327
    %v365 = vunpack.c.l.b16 %v333
    %v366 = vunpack.c.h.b16 %v333
    %v367 = vunpack.c.l.b16 %v334
    %v368 = vunpack.c.h.b16 %v334
    %v369 = vunpack.c.l.b16 %v335
    %v370 = vunpack.c.h.b16 %v335
    %v371 = vunpack.c.l.b16 %v336
    %v372 = vunpack.c.h.b16 %v336
    %v373 = vunpack.c.l.b16 %v337
    %v374 = vunpack.c.h.b16 %v337
    %v375 = vunpack.c.l.b16 %v338
    %v376 = vunpack.c.h.b16 %v338
    %v377 = vunpack.c.l.b16 %v339
    %v378 = vunpack.c.h.b16 %v339
    %v379 = vunpack.c.l.b16 %v340
    %v380 = vunpack.c.h.b16 %v340
    %v381 = vunpack.c.l.b16 %v341
    %v382 = vunpack.c.h.b16 %v341
    %v383 = vunpack.c.l.b16 %v342
    %v384 = vunpack.c.h.b16 %v342
    %v385 = vunpack.c.l.b16 %v343
    %v386 = vunpack.c.h.b16 %v343
    %v387 = vunpack.c.l.b16 %v344
    %v388 = vunpack.c.h.b16 %v344
    %v389 = vunpack.c.l.b16 %v345
    %v390 = vunpack.c.h.b16 %v345
    %v391 = vunpack.c.l.b16 %v346
    %v392 = vunpack.c.h.b16 %v346
    %v393 = vunpack.c.l.b16 %v347
    %v394 = vunpack.c.h.b16 %v347
    %v395 = vunpack.c.l.b16 %v348
    %v396 = vunpack.c.h.b16 %v348
    %v397 = vpack.c.b16 %v365, %v365
    %v398 = vpack.c.b16 %v366, %v366
    %v399 = vpack.c.b16 %v367, %v367
    %v400 = vpack.c.b16 %v368, %v368
    %v401 = vpack.c.b16 %v369, %v369
    %v402 = vpack.c.b16 %v370, %v370
    %v403 = vpack.c.b16 %v371, %v371
    %v404 = vpack.c.b16 %v372, %v372
    %v405 = vpack.c.b16 %v373, %v373
    %v406 = vpack.c.b16 %v374, %v374
    %v407 = vpack.c.b16 %v375, %v375
    %v408 = vpack.c.b16 %v376, %v376
    %v409 = vpack.c.b16 %v377, %v377
    %v410 = vpack.c.b16 %v378, %v378
    %v411 = vpack.c.b16 %v379, %v379
    %v412 = vpack.c.b16 %v380, %v380
    %v413 = vpack.c.b16 %v381, %v381
    %v414 = vpack.c.b16 %v382, %v382
    %v415 = vpack.c.b16 %v383, %v383
    %v416 = vpack.c.b16 %v384, %v384
    %v417 = vpack.c.b16 %v385, %v385
    %v418 = vpack.c.b16 %v386, %v386
    %v419 = vpack.c.b16 %v387, %v387
    %v420 = vpack.c.b16 %v388, %v388
    %v421 = vpack.c.b16 %v389, %v389
    %v422 = vpack.c.b16 %v390, %v390
    %v423 = vpack.c.b16 %v391, %v391
    %v424 = vpack.c.b16 %v392, %v392
    %v425 = vpack.c.b16 %v393, %v393
    %v426 = vpack.c.b16 %v394, %v394
    %v427 = vpack.c.b16 %v395, %v395
    %v428 = vpack.c.b16 %v396, %v396
    %461 = vst [vmem:[#allocation8] sm:$0xf] %v397
    %462 = vst [vmem:[#allocation8 + $0x4] sm:$0xf] %v398
    %463 = vst [vmem:[#allocation8 + $0x8] sm:$0xf] %v399
    %464 = vst [vmem:[#allocation8 + $0xc] sm:$0xf] %v400
    %465 = vst [vmem:[#allocation8 + $0x10] sm:$0xf] %v401
    %466 = vst [vmem:[#allocation8 + $0x14] sm:$0xf] %v402
    %467 = vst [vmem:[#allocation8 + $0x18] sm:$0xf] %v403
    %468 = vst [vmem:[#allocation8 + $0x1c] sm:$0xf] %v404
    %469 = vst [vmem:[#allocation8 + $0x20] sm:$0xf] %v405
    %470 = vst [vmem:[#allocation8 + $0x24] sm:$0xf] %v406
    %471 = vst [vmem:[#allocation8 + $0x28] sm:$0xf] %v407
    %472 = vst [vmem:[#allocation8 + $0x2c] sm:$0xf] %v408
    %473 = vst [vmem:[#allocation8 + $0x30] sm:$0xf] %v409
    %474 = vst [vmem:[#allocation8 + $0x34] sm:$0xf] %v410
    %475 = vst [vmem:[#allocation8 + $0x38] sm:$0xf] %v411
    %476 = vst [vmem:[#allocation8 + $0x3c] sm:$0xf] %v412
    %477 = vst [vmem:[#allocation8 + $0x40] sm:$0xf] %v413
    %478 = vst [vmem:[#allocation8 + $0x44] sm:$0xf] %v414
    %479 = vst [vmem:[#allocation8 + $0x48] sm:$0xf] %v415
    %480 = vst [vmem:[#allocation8 + $0x4c] sm:$0xf] %v416
    %481 = vst [vmem:[#allocation8 + $0x50] sm:$0xf] %v417
    %482 = vst [vmem:[#allocation8 + $0x54] sm:$0xf] %v418
    %483 = vst [vmem:[#allocation8 + $0x58] sm:$0xf] %v419
    %484 = vst [vmem:[#allocation8 + $0x5c] sm:$0xf] %v420
    %485 = vst [vmem:[#allocation8 + $0x60] sm:$0xf] %v421
    %486 = vst [vmem:[#allocation8 + $0x64] sm:$0xf] %v422
    %487 = vst [vmem:[#allocation8 + $0x68] sm:$0xf] %v423
    %488 = vst [vmem:[#allocation8 + $0x6c] sm:$0xf] %v424
    %489 = vst [vmem:[#allocation8 + $0x70] sm:$0xf] %v425
    %490 = vst [vmem:[#allocation8 + $0x74] sm:$0xf] %v426
    %491 = vst [vmem:[#allocation8 + $0x78] sm:$0xf] %v427
    %492 = vst [vmem:[#allocation8 + $0x7c] sm:$0xf] %v428
    %v493 = vld [vmem:[#allocation7] sm:$0xf]
    %v494 = vld [vmem:[#allocation7 + $0x4] sm:$0xf]
    %v495 = vld [vmem:[#allocation7 + $0x8] sm:$0xf]
    %v496 = vld [vmem:[#allocation7 + $0xc] sm:$0xf]
    %v497 = vld [vmem:[#allocation7 + $0x10] sm:$0xf]
    %v498 = vld [vmem:[#allocation7 + $0x14] sm:$0xf]
    %v499 = vld [vmem:[#allocation7 + $0x18] sm:$0xf]
    %v500 = vld [vmem:[#allocation7 + $0x1c] sm:$0xf]
    %v501 = vld [vmem:[#allocation7 + $0x20] sm:$0xf]
    %v502 = vld [vmem:[#allocation7 + $0x24] sm:$0xf]
    %v503 = vld [vmem:[#allocation7 + $0x28] sm:$0xf]
    %v504 = vld [vmem:[#allocation7 + $0x2c] sm:$0xf]
    %v505 = vld [vmem:[#allocation7 + $0x30] sm:$0xf]
    %v506 = vld [vmem:[#allocation7 + $0x34] sm:$0xf]
    %v507 = vld [vmem:[#allocation7 + $0x38] sm:$0xf]
    %v508 = vld [vmem:[#allocation7 + $0x3c] sm:$0xf]
    %v525 = vunpack.c.l.b16 %v493
    %v526 = vunpack.c.l.b16 %v494
    %v527 = vunpack.c.l.b16 %v495
    %v528 = vunpack.c.l.b16 %v496
    %v529 = vunpack.c.l.b16 %v497
    %v530 = vunpack.c.l.b16 %v498
    %v531 = vunpack.c.l.b16 %v499
    %v532 = vunpack.c.l.b16 %v500
    %v533 = vunpack.c.l.b16 %v501
    %v534 = vunpack.c.l.b16 %v502
    %v535 = vunpack.c.l.b16 %v503
    %v536 = vunpack.c.l.b16 %v504
    %v537 = vunpack.c.l.b16 %v505
    %v538 = vunpack.c.l.b16 %v506
    %v539 = vunpack.c.l.b16 %v507
    %v540 = vunpack.c.l.b16 %v508
    %v541 = vpack.c.b16 %v526, %v525
    %v542 = vpack.c.b16 %v528, %v527
    %v543 = vpack.c.b16 %v530, %v529
    %v544 = vpack.c.b16 %v532, %v531
    %v545 = vpack.c.b16 %v534, %v533
    %v546 = vpack.c.b16 %v536, %v535
    %v547 = vpack.c.b16 %v538, %v537
    %v548 = vpack.c.b16 %v540, %v539
    %557 = vmatprep.subr.bf16.mxu0 0
    %558 = vmatpush1.bf16.msra.mxu0 %v541
    %559 = vmatprep.subr.bf16.mxu0 0
    %560 = vmatpush1.bf16.msra.mxu0 %v542
    %561 = vmatprep.subr.bf16.mxu0 0
    %562 = vmatpush1.bf16.msra.mxu0 %v543
    %563 = vmatprep.subr.bf16.mxu0 0
    %564 = vmatpush1.bf16.msra.mxu0 %v544
    %565 = vmatprep.subr.bf16.mxu0 0
    %566 = vmatpush1.bf16.msra.mxu0 %v545
    %567 = vmatprep.subr.bf16.mxu0 0
    %568 = vmatpush1.bf16.msra.mxu0 %v546
    %569 = vmatprep.subr.bf16.mxu0 0
    %570 = vmatpush1.bf16.msra.mxu0 %v547
    %571 = vmatprep.subr.bf16.mxu0 0
    %572 = vmatpush1.bf16.msra.mxu0 %v548
    %573 = vmatprep.subr.bf16.mxu0 0
    %574 = vmatpush1.bf16.msra.mxu0 0
    %575 = vmatprep.subr.bf16.mxu0 0
    %576 = vmatpush1.bf16.msra.mxu0 0
    %577 = vmatprep.subr.bf16.mxu0 0
    %578 = vmatpush1.bf16.msra.mxu0 0
    %579 = vmatprep.subr.bf16.mxu0 0
    %580 = vmatpush1.bf16.msra.mxu0 0
    %581 = vmatprep.subr.bf16.mxu0 0
    %582 = vmatpush1.bf16.msra.mxu0 0
    %583 = vmatprep.subr.bf16.mxu0 0
    %584 = vmatpush1.bf16.msra.mxu0 0
    %585 = vmatprep.subr.bf16.mxu0 0
    %586 = vmatpush1.bf16.msra.mxu0 0
    %587 = vmatprep.subr.bf16.mxu0 0
    %588 = vmatpush1.bf16.msra.mxu0 0
    %589 = vmatprep.mubr.bf16.mxu0 0
    %590 = vmatmul.mubr.bf16.gmra.mrb[0].mxu0 %v333
    %v591 = vpop.f32.mrb[0].mxu0
    %v592 = vadd.f32 0.0, %v591
    %v593 = vpop.f32.mrb[0].mxu0
    %v594 = vpop.f32.mrb[0].mxu0
    %v595 = vadd.f32 0.0, %v594
    %v596 = vpop.f32.mrb[0].mxu0
    %597 = vmatprep.mubr.bf16.mxu0 0
    %598 = vmatmul.mubr.bf16.gmra.mrb[0].mxu0 %v334
    %v599 = vpop.f32.mrb[0].mxu0
    %v600 = vadd.f32 0.0, %v599
    %v601 = vpop.f32.mrb[0].mxu0
    %v602 = vpop.f32.mrb[0].mxu0
    %v603 = vadd.f32 0.0, %v602
    %v604 = vpop.f32.mrb[0].mxu0
    %605 = vmatprep.mubr.bf16.mxu0 0
    %606 = vmatmul.mubr.bf16.gmra.mrb[0].mxu0 %v335
    %v607 = vpop.f32.mrb[0].mxu0
    %v608 = vadd.f32 0.0, %v607
    %v609 = vpop.f32.mrb[0].mxu0
    %v610 = vpop.f32.mrb[0].mxu0
    %v611 = vadd.f32 0.0, %v610
    %v612 = vpop.f32.mrb[0].mxu0
    %613 = vmatprep.mubr.bf16.mxu0 0
    %614 = vmatmul.mubr.bf16.gmra.mrb[0].mxu0 %v336
    %v615 = vpop.f32.mrb[0].mxu0
    %v616 = vadd.f32 0.0, %v615
    %v617 = vpop.f32.mrb[0].mxu0
    %v618 = vpop.f32.mrb[0].mxu0
    %v619 = vadd.f32 0.0, %v618
    %v620 = vpop.f32.mrb[0].mxu0
    %621 = vmatprep.mubr.bf16.mxu0 0
    %622 = vmatmul.mubr.bf16.gmra.mrb[0].mxu0 %v337
    %v623 = vpop.f32.mrb[0].mxu0
    %v624 = vadd.f32 0.0, %v623
    %v625 = vpop.f32.mrb[0].mxu0
    %v626 = vpop.f32.mrb[0].mxu0
    %v627 = vadd.f32 0.0, %v626
    %v628 = vpop.f32.mrb[0].mxu0
    %629 = vmatprep.mubr.bf16.mxu0 0
    %630 = vmatmul.mubr.bf16.gmra.mrb[0].mxu0 %v338
    %v631 = vpop.f32.mrb[0].mxu0
    %v632 = vadd.f32 0.0, %v631
    %v633 = vpop.f32.mrb[0].mxu0
    %v634 = vpop.f32.mrb[0].mxu0
    %v635 = vadd.f32 0.0, %v634
    %v636 = vpop.f32.mrb[0].mxu0
    %637 = vmatprep.mubr.bf16.mxu0 0
    %638 = vmatmul.mubr.bf16.gmra.mrb[0].mxu0 %v339
    %v639 = vpop.f32.mrb[0].mxu0
    %v640 = vadd.f32 0.0, %v639
    %v641 = vpop.f32.mrb[0].mxu0
    %v642 = vpop.f32.mrb[0].mxu0
    %v643 = vadd.f32 0.0, %v642
    %v644 = vpop.f32.mrb[0].mxu0
    %645 = vmatprep.mubr.bf16.mxu0 0
    %646 = vmatmul.mubr.bf16.gmra.mrb[0].mxu0 %v340
    %v647 = vpop.f32.mrb[0].mxu0
    %v648 = vadd.f32 0.0, %v647
    %v649 = vpop.f32.mrb[0].mxu0
    %v650 = vpop.f32.mrb[0].mxu0
    %v651 = vadd.f32 0.0, %v650
    %v652 = vpop.f32.mrb[0].mxu0
    %653 = vmatprep.mubr.bf16.mxu0 0
    %654 = vmatmul.mubr.bf16.gmra.mrb[0].mxu0 %v341
    %v655 = vpop.f32.mrb[0].mxu0
    %v656 = vadd.f32 0.0, %v655
    %v657 = vpop.f32.mrb[0].mxu0
    %v658 = vpop.f32.mrb[0].mxu0
    %v659 = vadd.f32 0.0, %v658
    %v660 = vpop.f32.mrb[0].mxu0
    %661 = vmatprep.mubr.bf16.mxu0 0
    %662 = vmatmul.mubr.bf16.gmra.mrb[0].mxu0 %v342
    %v663 = vpop.f32.mrb[0].mxu0
    %v664 = vadd.f32 0.0, %v663
    %v665 = vpop.f32.mrb[0].mxu0
    %v666 = vpop.f32.mrb[0].mxu0
    %v667 = vadd.f32 0.0, %v666
    %v668 = vpop.f32.mrb[0].mxu0
    %669 = vmatprep.mubr.bf16.mxu0 0
    %670 = vmatmul.mubr.bf16.gmra.mrb[0].mxu0 %v343
    %v671 = vpop.f32.mrb[0].mxu0
    %v672 = vadd.f32 0.0, %v671
    %v673 = vpop.f32.mrb[0].mxu0
    %v674 = vpop.f32.mrb[0].mxu0
    %v675 = vadd.f32 0.0, %v674
    %v676 = vpop.f32.mrb[0].mxu0
    %677 = vmatprep.mubr.bf16.mxu0 0
    %678 = vmatmul.mubr.bf16.gmra.mrb[0].mxu0 %v344
    %v679 = vpop.f32.mrb[0].mxu0
    %v680 = vadd.f32 0.0, %v679
    %v681 = vpop.f32.mrb[0].mxu0
    %v682 = vpop.f32.mrb[0].mxu0
    %v683 = vadd.f32 0.0, %v682
    %v684 = vpop.f32.mrb[0].mxu0
    %685 = vmatprep.mubr.bf16.mxu0 0
    %686 = vmatmul.mubr.bf16.gmra.mrb[0].mxu0 %v345
    %v687 = vpop.f32.mrb[0].mxu0
    %v688 = vadd.f32 0.0, %v687
    %v689 = vpop.f32.mrb[0].mxu0
    %v690 = vpop.f32.mrb[0].mxu0
    %v691 = vadd.f32 0.0, %v690
    %v692 = vpop.f32.mrb[0].mxu0
    %693 = vmatprep.mubr.bf16.mxu0 0
    %694 = vmatmul.mubr.bf16.gmra.mrb[0].mxu0 %v346
    %v695 = vpop.f32.mrb[0].mxu0
    %v696 = vadd.f32 0.0, %v695
    %v697 = vpop.f32.mrb[0].mxu0
    %v698 = vpop.f32.mrb[0].mxu0
    %v699 = vadd.f32 0.0, %v698
    %v700 = vpop.f32.mrb[0].mxu0
    %701 = vmatprep.mubr.bf16.mxu0 0
    %702 = vmatmul.mubr.bf16.gmra.mrb[0].mxu0 %v347
    %v703 = vpop.f32.mrb[0].mxu0
    %v704 = vadd.f32 0.0, %v703
    %v705 = vpop.f32.mrb[0].mxu0
    %v706 = vpop.f32.mrb[0].mxu0
    %v707 = vadd.f32 0.0, %v706
    %v708 = vpop.f32.mrb[0].mxu0
    %709 = vmatprep.mubr.bf16.mxu0 0
    %710 = vmatmul.mubr.bf16.gmra.mrb[0].mxu0 %v348
    %v711 = vpop.f32.mrb[0].mxu0
    %v712 = vadd.f32 0.0, %v711
    %v713 = vpop.f32.mrb[0].mxu0
    %v714 = vpop.f32.mrb[0].mxu0
    %v715 = vadd.f32 0.0, %v714
    %v716 = vpop.f32.mrb[0].mxu0
    %717 = vdwg.mxu0
    %718 = vst [vmem:[#allocation9] sm:$0xff] %v592
    %719 = vst [vmem:[#allocation9 + $0x8] sm:$0xff] %v595
    %720 = vst [vmem:[#allocation9 + $0x10] sm:$0xff] %v600
    %721 = vst [vmem:[#allocation9 + $0x18] sm:$0xff] %v603
    %722 = vst [vmem:[#allocation9 + $0x20] sm:$0xff] %v608
    %723 = vst [vmem:[#allocation9 + $0x28] sm:$0xff] %v611
    %724 = vst [vmem:[#allocation9 + $0x30] sm:$0xff] %v616
    %725 = vst [vmem:[#allocation9 + $0x38] sm:$0xff] %v619
    %726 = vst [vmem:[#allocation9 + $0x40] sm:$0xff] %v624
    %727 = vst [vmem:[#allocation9 + $0x48] sm:$0xff] %v627
    %728 = vst [vmem:[#allocation9 + $0x50] sm:$0xff] %v632
    %729 = vst [vmem:[#allocation9 + $0x58] sm:$0xff] %v635
    %730 = vst [vmem:[#allocation9 + $0x60] sm:$0xff] %v640
    %731 = vst [vmem:[#allocation9 + $0x68] sm:$0xff] %v643
    %732 = vst [vmem:[#allocation9 + $0x70] sm:$0xff] %v648
    %733 = vst [vmem:[#allocation9 + $0x78] sm:$0xff] %v651
    %734 = vst [vmem:[#allocation9 + $0x80] sm:$0xff] %v656
    %735 = vst [vmem:[#allocation9 + $0x88] sm:$0xff] %v659
    %736 = vst [vmem:[#allocation9 + $0x90] sm:$0xff] %v664
    %737 = vst [vmem:[#allocation9 + $0x98] sm:$0xff] %v667
    %738 = vst [vmem:[#allocation9 + $0xa0] sm:$0xff] %v672
    %739 = vst [vmem:[#allocation9 + $0xa8] sm:$0xff] %v675
    %740 = vst [vmem:[#allocation9 + $0xb0] sm:$0xff] %v680
    %741 = vst [vmem:[#allocation9 + $0xb8] sm:$0xff] %v683
    %742 = vst [vmem:[#allocation9 + $0xc0] sm:$0xff] %v688
    %743 = vst [vmem:[#allocation9 + $0xc8] sm:$0xff] %v691
    %744 = vst [vmem:[#allocation9 + $0xd0] sm:$0xff] %v696
    %745 = vst [vmem:[#allocation9 + $0xd8] sm:$0xff] %v699
    %746 = vst [vmem:[#allocation9 + $0xe0] sm:$0xff] %v704
    %747 = vst [vmem:[#allocation9 + $0xe8] sm:$0xff] %v707
    %748 = vst [vmem:[#allocation9 + $0xf0] sm:$0xff] %v712
    %749 = vst [vmem:[#allocation9 + $0xf8] sm:$0xff] %v715
    // Predicated region
    $region26: #{tpu_custom_call.1} parent=1 // pred_check
      _
    $region27: #{tpu_custom_call.1} parent=1 // pred_check_branch
      %751 = sbr.rel (0) target = $region29
    $region28: #{tpu_custom_call.1} parent=1 // pred_region
      %s753 = ssub.s32 2048, 2048
      %754 = vsyncadd [#allocation4], %s753
      %s755 = sshll.u32 [#allocation8], 4
      %s756 = int_to_ptr.vmem [resolvable:$true] %s755
      %761 = dma.vmem_to_hbm [thread:$0]  %s756, 2048, %s3, [#allocation4], 64, 64, 4
    $region29: #{tpu_custom_call.1} parent=1 // pred_fallthru
      _
    // Predicated region
    $region30: #{tpu_custom_call.1} parent=1 // pred_check
      _
    $region31: #{tpu_custom_call.1} parent=1 // pred_check_branch
      %763 = sbr.rel (0) target = $region33
    $region32: #{tpu_custom_call.1} parent=1 // pred_region
      %s765 = ssub.s32 4096, 4096
      %766 = vsyncadd [#allocation10], %s765
      %s767 = sshll.u32 [#allocation9], 4
      %s768 = int_to_ptr.vmem [resolvable:$true] %s767
      %773 = dma.vmem_to_hbm [thread:$0]  %s768, 4096, %s4, [#allocation10], 128, 128, 8
    $region33: #{tpu_custom_call.1} parent=1 // pred_fallthru
      _
    // Predicated region
    $region34: #{tpu_custom_call.1} parent=1 // pred_check
      _
    $region35: #{tpu_custom_call.1} parent=1 // pred_check_branch
      %775 = sbr.rel (0) target = $region37
    $region36: #{tpu_custom_call.1} parent=1 // pred_region
      %776 = dma.done [#allocation4], 2048
    $region37: #{tpu_custom_call.1} parent=1 // pred_fallthru
      _
    // Predicated region
    $region38: #{tpu_custom_call.1} parent=1 // pred_check
      _
    $region39: #{tpu_custom_call.1} parent=1 // pred_check_branch
      %778 = sbr.rel (0) target = $region41
    $region40: #{tpu_custom_call.1} parent=1 // pred_region
      %779 = dma.done [#allocation10], 4096
    $region41: #{tpu_custom_call.1} parent=1 // pred_fallthru
      _
    %780 = vsyncpa [#allocation3], 1
    %781 = vsyncpa [#allocation6], 1
    %782 = vsyncpa [#allocation4], 1
    %783 = vsyncpa [#allocation10], 1

</llo_original>
